<compile_context>
chip_gen: v7x
topology: tpu7x:2x2x1
jax: 0.10.0
libtpu: 0.0.40
codegen_flags: <defaults>
</compile_context>

<pallas_src>
import numpy as np
import jax
import jax.numpy as jnp
from jax import lax
from jax.experimental import pallas as pl
from jax.experimental.pallas import tpu as pltpu


def hard_attn_kernel(v_ref,      # (TB, Lp, H) padded session embeddings
                     q_ref,      # (TB, H)     query rows
                     lens_ref,   # (TB, 1)     int32 sequence lengths
                     w_ref,      # (3, H, H)   stacked [K;Q;V] weights (pre-transposed)
                     b_ref,      # (8, H)      stacked biases (rows 0..2 used)
                     o_ref):     # (TB, H)
    TB, L, H = v_ref.shape

    kwt = w_ref[0]                 # (H, H)
    qwt = w_ref[1]
    vwt = w_ref[2]
    kb = b_ref[0:1, :]             # (1, H)
    qb = b_ref[1:2, :]
    vb = b_ref[2:3, :]

    # K projection (bias folded out, see header): one MXU matmul over TB*L rows.
    v2 = v_ref[...].reshape(TB * L, H)
    kv = jnp.dot(v2, kwt, preferred_element_type=jnp.float32).reshape(TB, L, H)

    # Q projection: (TB, H) @ (H, H)
    qq = jnp.dot(q_ref[...], qwt, preferred_element_type=jnp.float32) + qb   # (TB, H)

    # Attention logits: last-axis contraction on the VPU (no transpose).
    # (K bias would add a per-row constant here -> softmax invariant, omitted.)
    scores = jnp.sum(kv * qq[:, None, :], axis=-1)                           # (TB, L)

    # Sequence mask + masked softmax over L.
    idx = lax.broadcasted_iota(jnp.int32, (TB, L), 1)
    mask = idx < lens_ref[...]                                               # (TB, 1) bcast
    scores = jnp.where(mask, scores, jnp.float32(-1e30))
    m = jnp.max(scores, axis=-1, keepdims=True)
    e = jnp.exp(scores - m)
    attn = e / jnp.sum(e, axis=-1, keepdims=True)                            # (TB, L)

    # Weighted sum over sequence positions; add the folded K bias (sum(attn)=1).
    seq_feat = jnp.sum(kv * attn[:, :, None], axis=1) + kb                   # (TB, H)

    # V projection: (TB, H) @ (H, H)
    out = jnp.dot(seq_feat, vwt, preferred_element_type=jnp.float32) + vb
    o_ref[...] = out.astype(o_ref.dtype)


def hard_attn(v_pad, query, seq_lens, params, *, tb=8):
    """v_pad: [B, L, H] f32, query: [B, H] f32, seq_lens: [B] int."""
    B, L, H = v_pad.shape
    kwt, kb, qwt, qb, vwt, vb = params

    # Consolidate weights / biases into two inputs (fewer tiny DMAs).
    w_stack = jnp.stack([kwt, qwt, vwt], axis=0)                  # (3, H, H)
    b_stack = (jnp.zeros((8, H), jnp.float32)
               .at[0].set(kb[0]).at[1].set(qb[0]).at[2].set(vb[0]))

    TB = max(8, int(tb))                       # sublane-aligned batch tile
    Lp = ((L + 7) // 8) * 8                    # sublane-aligned seq pad
    Bp = ((B + TB - 1) // TB) * TB

    v_p = jnp.zeros((Bp, Lp, H), v_pad.dtype).at[:B, :L].set(v_pad)
    q_p = jnp.zeros((Bp, H), query.dtype).at[:B].set(query)
    lens_p = jnp.zeros((Bp, 1), jnp.int32).at[:B, 0].set(seq_lens.astype(jnp.int32))

    out = pl.pallas_call(
        hard_attn_kernel,
        out_shape=jax.ShapeDtypeStruct((Bp, H), jnp.float32),
        grid=(Bp // TB,),
        in_specs=[
            pl.BlockSpec((TB, Lp, H), lambda i: (i, 0, 0)),   # v tile
            pl.BlockSpec((TB, H),     lambda i: (i, 0)),      # query tile
            pl.BlockSpec((TB, 1),     lambda i: (i, 0)),      # seq_lens tile
            pl.BlockSpec((3, H, H),   lambda i: (0, 0, 0)),   # stacked weights
            pl.BlockSpec((8, H),      lambda i: (0, 0)),      # stacked biases
        ],
        out_specs=pl.BlockSpec((TB, H), lambda i: (i, 0)),
        compiler_params=pltpu.CompilerParams(
            dimension_semantics=("parallel",)),   # batch tiles are independent
    )(v_p, q_p, lens_p, w_stack, b_stack)
    return out[:B]


def pad_sections(sess_embed, sections, max_len):
    """pad_sequence(torch.split(...), batch_first=True) equivalent (static sections)."""
    B = len(sections)
    H = sess_embed.shape[-1]
    offsets = np.cumsum([0] + list(sections))
    v_pad = jnp.zeros((B, max_len, H), dtype=sess_embed.dtype)
    for i, s in enumerate(sections):
        v_pad = v_pad.at[i, :s].set(sess_embed[offsets[i]:offsets[i] + s])
    return v_pad


def reference_forward(v_pad, query, seq_lens, params):
    """Plain-JAX mirror of the PyTorch forward for verification."""
    kwt, kb, qwt, qb, vwt, vb = params
    B, L, H = v_pad.shape
    kv = v_pad @ kwt + kb                                  # (B, L, H)
    qq = query @ qwt + qb                                  # (B, H)
    scores = jnp.sum(kv * qq[:, None, :], axis=-1)         # (B, L)
    mask = jnp.arange(L)[None, :] < seq_lens[:, None]
    pad_val = jnp.float32(-2.0 ** 32 + 1.0)
    scores = jnp.where(mask, scores, pad_val)
    attn = jax.nn.softmax(scores, axis=-1)
    seq_feat = jnp.sum(kv * attn[:, :, None], axis=1)      # (B, H)
    return seq_feat @ vwt + vb


def init_params(key, hidden_size):
    """Deterministic init matching nn.Linear + xavier_normal_ on weights."""
    H = hidden_size
    ks = jax.random.split(key, 6)
    xavier_std = np.sqrt(2.0 / (H + H))
    bias_bound = 1.0 / np.sqrt(H)

    def w(k):   # stored transposed: [H_in, H_out]
        return jax.random.normal(k, (H, H), jnp.float32) * xavier_std

    def b(k):
        return jax.random.uniform(k, (1, H), jnp.float32,
                                  minval=-bias_bound, maxval=bias_bound)

    return (w(ks[0]), b(ks[1]), w(ks[2]), b(ks[3]), w(ks[4]), b(ks[5]))


if __name__ == "__main__":
    hidden_size = 32
    sections = [8, 5, 8, 3]               # per-session lengths
    B = len(sections)
    L = max(sections)
    total = sum(sections)

    key = jax.random.PRNGKey(0)
    k_embed, k_query, k_params = jax.random.split(key, 3)

    sess_embed = jax.random.normal(k_embed, (total, hidden_size), jnp.float32)
    query = jax.random.normal(k_query, (B, hidden_size), jnp.float32)
    seq_lens = jnp.asarray(sections, dtype=jnp.int32)
    params = init_params(k_params, hidden_size)

    v_pad = pad_sections(sess_embed, sections, L)

    out = hard_attn(v_pad, query, seq_lens, params)
    out = jax.block_until_ready(out)

    ref = reference_forward(v_pad, query, seq_lens, params)
    np.testing.assert_allclose(np.asarray(out), np.asarray(ref),
                               rtol=1e-4, atol=1e-4)
    print("KERNEL_OK")
</pallas_src>

<mosaic_0001>
module attributes {stable_mosaic.version = 11 : i64} {
  func.func @hard_attn_kernel(%arg0: i32, %arg1: memref<8x8x32xf32, #tpu.memory_space<vmem>>, %arg2: memref<8x32xf32, #tpu.memory_space<vmem>>, %arg3: memref<8x1xi32, #tpu.memory_space<vmem>>, %arg4: memref<3x32x32xf32, #tpu.memory_space<vmem>>, %arg5: memref<8x32xf32, #tpu.memory_space<vmem>>, %arg6: memref<8x32xf32, #tpu.memory_space<vmem>>) attributes {dimension_semantics = [#tpu.dimension_semantics<parallel>], iteration_bounds = array<i64: 1>, scalar_prefetch = 0 : i64, scratch_operands = 0 : i64, tpu.core_type = #tpu.core_type<tc>, window_params = [{transform_indices = @transform_0, window_bounds = array<i64: 8, 8, 32>}, {transform_indices = @transform_1, window_bounds = array<i64: 8, 32>}, {transform_indices = @transform_2, window_bounds = array<i64: 8, 1>}, {pipeline_mode = #tpu.pipeline_mode<synchronous>, transform_indices = @transform_3, window_bounds = array<i64: 3, 32, 32>}, {pipeline_mode = #tpu.pipeline_mode<synchronous>, transform_indices = @transform_4, window_bounds = array<i64: 8, 32>}, {transform_indices = @transform_5, window_bounds = array<i64: 8, 32>}]} {
    %c0 = arith.constant 0 : index
    %c0_0 = arith.constant 0 : index
    %c0_1 = arith.constant 0 : index
    %0 = vector.load %arg4[%c0, %c0_0, %c0_1] : memref<3x32x32xf32, #tpu.memory_space<vmem>>, vector<1x32x32xf32>
    %1 = vector.shape_cast %0 : vector<1x32x32xf32> to vector<32x32xf32>
    %c1 = arith.constant 1 : index
    %c0_2 = arith.constant 0 : index
    %c0_3 = arith.constant 0 : index
    %2 = vector.load %arg4[%c1, %c0_2, %c0_3] : memref<3x32x32xf32, #tpu.memory_space<vmem>>, vector<1x32x32xf32>
    %3 = vector.shape_cast %2 : vector<1x32x32xf32> to vector<32x32xf32>
    %c2 = arith.constant 2 : index
    %c0_4 = arith.constant 0 : index
    %c0_5 = arith.constant 0 : index
    %4 = vector.load %arg4[%c2, %c0_4, %c0_5] : memref<3x32x32xf32, #tpu.memory_space<vmem>>, vector<1x32x32xf32>
    %5 = vector.shape_cast %4 : vector<1x32x32xf32> to vector<32x32xf32>
    %c0_6 = arith.constant 0 : index
    %c0_7 = arith.constant 0 : index
    %6 = vector.load %arg5[%c0_6, %c0_7] : memref<8x32xf32, #tpu.memory_space<vmem>>, vector<1x32xf32>
    %c1_8 = arith.constant 1 : index
    %c0_9 = arith.constant 0 : index
    %7 = vector.load %arg5[%c1_8, %c0_9] : memref<8x32xf32, #tpu.memory_space<vmem>>, vector<1x32xf32>
    %c2_10 = arith.constant 2 : index
    %c0_11 = arith.constant 0 : index
    %8 = vector.load %arg5[%c2_10, %c0_11] : memref<8x32xf32, #tpu.memory_space<vmem>>, vector<1x32xf32>
    %c0_12 = arith.constant 0 : index
    %c0_13 = arith.constant 0 : index
    %c0_14 = arith.constant 0 : index
    %9 = vector.load %arg1[%c0_12, %c0_13, %c0_14] : memref<8x8x32xf32, #tpu.memory_space<vmem>>, vector<8x8x32xf32>
    %10 = vector.shape_cast %9 : vector<8x8x32xf32> to vector<64x32xf32>
    %cst = arith.constant dense<0.000000e+00> : vector<64x32xf32>
    %11 = tpu.matmul %10, %1, %cst {dimension_numbers = #tpu.dot_dimension_numbers<[1], [0], [0], [1], [0, 0, 1, 1], [], []>} : vector<64x32xf32>, vector<32x32xf32>, vector<64x32xf32> -> vector<64x32xf32>
    %12 = vector.shape_cast %11 : vector<64x32xf32> to vector<8x8x32xf32>
    %c0_15 = arith.constant 0 : index
    %c0_16 = arith.constant 0 : index
    %13 = vector.load %arg2[%c0_15, %c0_16] : memref<8x32xf32, #tpu.memory_space<vmem>>, vector<8x32xf32>
    %cst_17 = arith.constant dense<0.000000e+00> : vector<8x32xf32>
    %14 = tpu.matmul %13, %3, %cst_17 {dimension_numbers = #tpu.dot_dimension_numbers<[1], [0], [0], [1], [0, 0, 1, 1], [], []>} : vector<8x32xf32>, vector<32x32xf32>, vector<8x32xf32> -> vector<8x32xf32>
    %15 = vector.broadcast %7 : vector<1x32xf32> to vector<8x32xf32>
    %16 = arith.addf %14, %15 : vector<8x32xf32>
    %17 = vector.shape_cast %16 : vector<8x32xf32> to vector<8x1x32xf32>
    %18 = vector.broadcast %17 : vector<8x1x32xf32> to vector<8x8x32xf32>
    %19 = arith.mulf %12, %18 : vector<8x8x32xf32>
    %cst_18 = arith.constant dense<0.000000e+00> : vector<8x8xf32>
    %20 = vector.multi_reduction <add>, %19, %cst_18 [2] : vector<8x8x32xf32> to vector<8x8xf32>
    %21 = tpu.iota {dimensions = array<i32: 1>} : vector<8x8xi32>
    %c0_19 = arith.constant 0 : index
    %c0_20 = arith.constant 0 : index
    %22 = vector.load %arg3[%c0_19, %c0_20] : memref<8x1xi32, #tpu.memory_space<vmem>>, vector<8x1xi32>
    %23 = vector.broadcast %22 : vector<8x1xi32> to vector<8x8xi32>
    %24 = arith.cmpi slt, %21, %23 : vector<8x8xi32>
    %cst_21 = arith.constant -1.000000e+30 : f32
    %25 = vector.broadcast %cst_21 : f32 to vector<8x8xf32>
    %26 = arith.select %24, %20, %25 : vector<8x8xi1>, vector<8x8xf32>
    %cst_22 = arith.constant dense<0xFF800000> : vector<8xf32>
    %27 = vector.multi_reduction <maximumf>, %26, %cst_22 [1] : vector<8x8xf32> to vector<8xf32>
    %28 = vector.shape_cast %27 : vector<8xf32> to vector<8x1xf32>
    %29 = vector.broadcast %28 : vector<8x1xf32> to vector<8x8xf32>
    %30 = arith.subf %26, %29 : vector<8x8xf32>
    %31 = math.exp %30 : vector<8x8xf32>
    %cst_23 = arith.constant dense<0.000000e+00> : vector<8xf32>
    %32 = vector.multi_reduction <add>, %31, %cst_23 [1] : vector<8x8xf32> to vector<8xf32>
    %33 = vector.shape_cast %32 : vector<8xf32> to vector<8x1xf32>
    %34 = vector.broadcast %33 : vector<8x1xf32> to vector<8x8xf32>
    %35 = arith.divf %31, %34 : vector<8x8xf32>
    %36 = vector.shape_cast %35 : vector<8x8xf32> to vector<8x8x1xf32>
    %37 = vector.broadcast %36 : vector<8x8x1xf32> to vector<8x8x32xf32>
    %38 = arith.mulf %12, %37 : vector<8x8x32xf32>
    %cst_24 = arith.constant dense<0.000000e+00> : vector<8x32xf32>
    %39 = vector.multi_reduction <add>, %38, %cst_24 [1] : vector<8x8x32xf32> to vector<8x32xf32>
    %40 = vector.broadcast %6 : vector<1x32xf32> to vector<8x32xf32>
    %41 = arith.addf %39, %40 : vector<8x32xf32>
    %cst_25 = arith.constant dense<0.000000e+00> : vector<8x32xf32>
    %42 = tpu.matmul %41, %5, %cst_25 {dimension_numbers = #tpu.dot_dimension_numbers<[1], [0], [0], [1], [0, 0, 1, 1], [], []>} : vector<8x32xf32>, vector<32x32xf32>, vector<8x32xf32> -> vector<8x32xf32>
    %43 = vector.broadcast %8 : vector<1x32xf32> to vector<8x32xf32>
    %44 = arith.addf %42, %43 : vector<8x32xf32>
    %c0_26 = arith.constant 0 : index
    %c0_27 = arith.constant 0 : index
    %45 = vector.load %arg6[%c0_26, %c0_27] : memref<8x32xf32, #tpu.memory_space<vmem>>, vector<8x32xf32>
    tpu.vector_store %arg6[%c0_26, %c0_27], %44 {strides = array<i32>} : memref<8x32xf32, #tpu.memory_space<vmem>>, vector<8x32xf32>,
    return
  }
  func.func @transform_0(%arg0: i32) -> (i32, i32, i32) {
    %c0_i32 = arith.constant 0 : i32
    %c0_i32_0 = arith.constant 0 : i32
    %c0_i32_1 = arith.constant 0 : i32
    return %arg0, %c0_i32, %c0_i32_0 : i32, i32, i32
  }
  func.func @transform_1(%arg0: i32) -> (i32, i32) {
    %c0_i32 = arith.constant 0 : i32
    %c0_i32_0 = arith.constant 0 : i32
    return %arg0, %c0_i32 : i32, i32
  }
  func.func @transform_2(%arg0: i32) -> (i32, i32) {
    %c0_i32 = arith.constant 0 : i32
    %c0_i32_0 = arith.constant 0 : i32
    return %arg0, %c0_i32 : i32, i32
  }
  func.func @transform_3(%arg0: i32) -> (i32, i32, i32) {
    %c0_i32 = arith.constant 0 : i32
    %c0_i32_0 = arith.constant 0 : i32
    %c0_i32_1 = arith.constant 0 : i32
    %c0_i32_2 = arith.constant 0 : i32
    return %c0_i32, %c0_i32_0, %c0_i32_1 : i32, i32, i32
  }
  func.func @transform_4(%arg0: i32) -> (i32, i32) {
    %c0_i32 = arith.constant 0 : i32
    %c0_i32_0 = arith.constant 0 : i32
    %c0_i32_1 = arith.constant 0 : i32
    return %c0_i32, %c0_i32_0 : i32, i32
  }
  func.func @transform_5(%arg0: i32) -> (i32, i32) {
    %c0_i32 = arith.constant 0 : i32
    %c0_i32_0 = arith.constant 0 : i32
    return %arg0, %c0_i32 : i32, i32
  }
}

</mosaic_0001>

<llo_original>
// kernel: tpu_custom_call.1
$region0: #{tpu_custom_call.1}
  #allocation0 [shape = 'u32[]', space=smem, size = 0x4, offset = 0x4, fixed_abs, tag = 'smem constant byte address 0x4 - core index']
  #allocation1 [shape = 'u32[144,128]{1,0:T(1,128)}', space=vmem, size = 0x12000, scoped, tag = 'internal scratch']
  %s0 = inlined_call_operand.hbm [shape: f32[8,8,32], index: 0, kind: input, shape index: {}]
  %s1 = inlined_call_operand.vmem [shape: f32[8,32], index: 1, kind: input, shape index: {}]
  %s2 = inlined_call_operand.vmem [shape: s32[8,1], index: 2, kind: input, shape index: {}]
  %s3 = inlined_call_operand.hbm [shape: f32[3,32,32], index: 3, kind: input, shape index: {}]
  %s4 = inlined_call_operand.vmem [shape: f32[8,32], index: 4, kind: input, shape index: {}]
  %s5 = inlined_call_operand.hbm [shape: f32[8,32], index: 5, kind: output, shape index: {}]
  %s6 = sld [smem:[#allocation0]]
  $region38: #{tpu_custom_call.1} parent=0
    _
  %s8 = ssub.s32 1, %s6
  %s9 = scalar_select 0, %s8, %s6
  $region1: #{tpu_custom_call.1} parent=0
    #allocation2 [shape = 'u8[32768]{0}', space=vmem, size = 0x8000, scoped, tag = 'input window, operand 0, single buffered']
    #allocation3 [shape = 's32[1]{0}', space=sflag, size = 0x4, scoped, tag = 'scoped memory for tpu_custom_call.1']
    #allocation4 [shape = 's32[1]{0}', space=sflag, size = 0x4, scoped, tag = 'scoped memory for tpu_custom_call.1']
    #allocation5 [shape = 'u8[49152]{0}', space=vmem, size = 0xc000, scoped, tag = 'input window, operand 3, single buffered']
    #allocation6 [shape = 's32[1]{0}', space=sflag, size = 0x4, scoped, tag = 'scoped memory for tpu_custom_call.1']
    #allocation7 [shape = 'u8[4096]{0}', space=vmem, size = 0x1000, scoped, tag = 'output window, operand 0, single buffered']
    %10 = vsyncpa [#allocation3], 0
    %11 = vsyncpa [#allocation6], 0
    %12 = vsyncpa [#allocation4], 0
    // Predicated region
    $region2: #{tpu_custom_call.1} parent=1 // pred_check
      _
    $region3: #{tpu_custom_call.1} parent=1 // pred_check_branch
      %14 = sbr.rel (0) target = $region5
    $region4: #{tpu_custom_call.1} parent=1 // pred_region
      %s16 = ssub.s32 1024, 1024
      %17 = vsyncadd [#allocation3], %s16
      %s18 = sshll.u32 [#allocation2], 4
      %s19 = int_to_ptr.vmem [resolvable:$true] %s18
      %24 = dma.hbm_to_vmem [thread:$0]  %s0, 1024, %s19, [#allocation3], 128, 128, 8
    $region5: #{tpu_custom_call.1} parent=1 // pred_fallthru
      _
    // Predicated region
    $region6: #{tpu_custom_call.1} parent=1 // pred_check
      _
    $region7: #{tpu_custom_call.1} parent=1 // pred_check_branch
      %26 = sbr.rel (0) target = $region9
    $region8: #{tpu_custom_call.1} parent=1 // pred_region
      _
    $region9: #{tpu_custom_call.1} parent=1 // pred_fallthru
      _
    // Predicated region
    $region10: #{tpu_custom_call.1} parent=1 // pred_check
      _
    $region11: #{tpu_custom_call.1} parent=1 // pred_check_branch
      %28 = sbr.rel (0) target = $region13
    $region12: #{tpu_custom_call.1} parent=1 // pred_region
      _
    $region13: #{tpu_custom_call.1} parent=1 // pred_fallthru
      _
    // Predicated region
    $region14: #{tpu_custom_call.1} parent=1 // pred_check
      _
    $region15: #{tpu_custom_call.1} parent=1 // pred_check_branch
      %30 = sbr.rel (0) target = $region17
    $region16: #{tpu_custom_call.1} parent=1 // pred_region
      %s32 = ssub.s32 1536, 1536
      %33 = vsyncadd [#allocation6], %s32
      %s34 = sshll.u32 [#allocation5], 4
      %s35 = int_to_ptr.vmem [resolvable:$true] %s34
      %40 = dma.hbm_to_vmem [thread:$0]  %s3, 1536, %s35, [#allocation6], 128, 128, 8
    $region17: #{tpu_custom_call.1} parent=1 // pred_fallthru
      _
    // Predicated region
    $region18: #{tpu_custom_call.1} parent=1 // pred_check
      _
    $region19: #{tpu_custom_call.1} parent=1 // pred_check_branch
      %42 = sbr.rel (0) target = $region21
    $region20: #{tpu_custom_call.1} parent=1 // pred_region
      _
    $region21: #{tpu_custom_call.1} parent=1 // pred_fallthru
      _
    // Predicated region
    $region22: #{tpu_custom_call.1} parent=1 // pred_check
      _
    $region23: #{tpu_custom_call.1} parent=1 // pred_check_branch
      %44 = sbr.rel (0) target = $region25
    $region24: #{tpu_custom_call.1} parent=1 // pred_region
      %45 = dma.done [#allocation3], 1024
    $region25: #{tpu_custom_call.1} parent=1 // pred_fallthru
      _
    // Predicated region
    $region26: #{tpu_custom_call.1} parent=1 // pred_check
      _
    $region27: #{tpu_custom_call.1} parent=1 // pred_check_branch
      %47 = sbr.rel (0) target = $region29
    $region28: #{tpu_custom_call.1} parent=1 // pred_region
      %48 = dma.done [#allocation6], 1536
    $region29: #{tpu_custom_call.1} parent=1 // pred_fallthru
      _
    %v49 = vld [vmem:[#allocation5] sm:$0xff]
    %v50 = vld [vmem:[#allocation5 + $0x8] sm:$0xff]
    %v51 = vld [vmem:[#allocation5 + $0x10] sm:$0xff]
    %v52 = vld [vmem:[#allocation5 + $0x18] sm:$0xff]
    %s53 = scalar_lea.vmem [#allocation5], 32
    %v54 = vld [vmem:[%s53] sm:$0xff]
    %v55 = vld [vmem:[%s53 + $0x8] sm:$0xff]
    %v56 = vld [vmem:[%s53 + $0x10] sm:$0xff]
    %v57 = vld [vmem:[%s53 + $0x18] sm:$0xff]
    %s58 = scalar_lea.vmem [#allocation5], 64
    %v59 = vld [vmem:[%s58] sm:$0xff]
    %v60 = vld [vmem:[%s58 + $0x8] sm:$0xff]
    %v61 = vld [vmem:[%s58 + $0x10] sm:$0xff]
    %v62 = vld [vmem:[%s58 + $0x18] sm:$0xff]
    %v63 = vld [vmem:[%s4] sm:$0x1]
    %v64 = vld [vmem:[%s4 + $0x1] sm:$0x1]
    %v65 = vld [vmem:[%s4 + $0x2] sm:$0x1]
    %v66 = vld [vmem:[#allocation2] sm:$0xff]
    %v67 = vld [vmem:[#allocation2 + $0x8] sm:$0xff]
    %v68 = vld [vmem:[#allocation2 + $0x10] sm:$0xff]
    %v69 = vld [vmem:[#allocation2 + $0x18] sm:$0xff]
    %v70 = vld [vmem:[#allocation2 + $0x20] sm:$0xff]
    %v71 = vld [vmem:[#allocation2 + $0x28] sm:$0xff]
    %v72 = vld [vmem:[#allocation2 + $0x30] sm:$0xff]
    %v73 = vld [vmem:[#allocation2 + $0x38] sm:$0xff]
    %vm74 = vcmask 261120
    %v76 = vsel %vm74, %v66, 0
    %v79 = vsel %vm74, %v67, 0
    %v82 = vsel %vm74, %v68, 0
    %v85 = vsel %vm74, %v69, 0
    %v88 = vsel %vm74, %v70, 0
    %v91 = vsel %vm74, %v71, 0
    %v94 = vsel %vm74, %v72, 0
    %v97 = vsel %vm74, %v73, 0
    %99 = vmatprep.subr.mxu0 0.0
    %100 = vmatpush1.msra.mxu0 %v49
    %101 = vmatprep.subr.mxu0 0.0
    %102 = vmatpush1.msra.mxu0 %v50
    %103 = vmatprep.subr.mxu0 0.0
    %104 = vmatpush1.msra.mxu0 %v51
    %105 = vmatprep.subr.mxu0 0.0
    %106 = vmatpush1.msra.mxu0 %v52
    %107 = vmatprep.subr.mxu0 0.0
    %108 = vmatpush1.msra.mxu0 0.0
    %109 = vmatprep.subr.mxu0 0.0
    %110 = vmatpush1.msra.mxu0 0.0
    %111 = vmatprep.subr.mxu0 0.0
    %112 = vmatpush1.msra.mxu0 0.0
    %113 = vmatprep.subr.mxu0 0.0
    %114 = vmatpush1.msra.mxu0 0.0
    %115 = vmatprep.subr.mxu0 0.0
    %116 = vmatpush1.msra.mxu0 0.0
    %117 = vmatprep.subr.mxu0 0.0
    %118 = vmatpush1.msra.mxu0 0.0
    %119 = vmatprep.subr.mxu0 0.0
    %120 = vmatpush1.msra.mxu0 0.0
    %121 = vmatprep.subr.mxu0 0.0
    %122 = vmatpush1.msra.mxu0 0.0
    %123 = vmatprep.subr.mxu0 0.0
    %124 = vmatpush1.msra.mxu0 0.0
    %125 = vmatprep.subr.mxu0 0.0
    %126 = vmatpush1.msra.mxu0 0.0
    %127 = vmatprep.subr.mxu0 0.0
    %128 = vmatpush1.msra.mxu0 0.0
    %129 = vmatprep.subr.mxu0 0.0
    %130 = vmatpush1.msra.mxu0 0.0
    %131 = vmatprep.subr.mxu0 0.0
    %132 = vmatpush1.msra.mxu0 0.0
    %133 = vmatprep.subr.mxu0 0.0
    %134 = vmatpush1.msra.mxu0 0.0
    %135 = vmatprep.subr.mxu0 0.0
    %136 = vmatpush1.msra.mxu0 0.0
    %137 = vmatprep.subr.mxu0 0.0
    %138 = vmatpush1.msra.mxu0 0.0
    %139 = vmatprep.subr.mxu0 0.0
    %140 = vmatpush1.msra.mxu0 0.0
    %141 = vmatprep.subr.mxu0 0.0
    %142 = vmatpush1.msra.mxu0 0.0
    %143 = vmatprep.subr.mxu0 0.0
    %144 = vmatpush1.msra.mxu0 0.0
    %145 = vmatprep.subr.mxu0 0.0
    %146 = vmatpush1.msra.mxu0 0.0
    %147 = vmatprep.subr.mxu0 0.0
    %148 = vmatpush1.msra.mxu0 0.0
    %149 = vmatprep.subr.mxu0 0.0
    %150 = vmatpush1.msra.mxu0 0.0
    %151 = vmatprep.subr.mxu0 0.0
    %152 = vmatpush1.msra.mxu0 0.0
    %153 = vmatprep.subr.mxu0 0.0
    %154 = vmatpush1.msra.mxu0 0.0
    %155 = vmatprep.subr.mxu0 0.0
    %156 = vmatpush1.msra.mxu0 0.0
    %157 = vmatprep.subr.mxu0 0.0
    %158 = vmatpush1.msra.mxu0 0.0
    %159 = vmatprep.subr.mxu0 0.0
    %160 = vmatpush1.msra.mxu0 0.0
    %161 = vmatprep.subr.mxu0 0.0
    %162 = vmatpush1.msra.mxu0 0.0
    %163 = vmatprep.mubr.f32.mxu0 0.0
    %164 = vmatmul.mubr.f32.gmra.mrb[0].mxu0 %v76
    %v165 = vpop.f32.mrb[0].mxu0
    %v166 = vadd.f32 0.0, %v165
    %v167 = vpop.f32.mrb[0].mxu0
    %168 = vmatprep.mubr.f32.mxu0 0.0
    %169 = vmatmul.mubr.f32.gmra.mrb[0].mxu0 %v79
    %v170 = vpop.f32.mrb[0].mxu0
    %v171 = vadd.f32 0.0, %v170
    %v172 = vpop.f32.mrb[0].mxu0
    %173 = vmatprep.mubr.f32.mxu0 0.0
    %174 = vmatmul.mubr.f32.gmra.mrb[0].mxu0 %v82
    %v175 = vpop.f32.mrb[0].mxu0
    %v176 = vadd.f32 0.0, %v175
    %v177 = vpop.f32.mrb[0].mxu0
    %178 = vmatprep.mubr.f32.mxu0 0.0
    %179 = vmatmul.mubr.f32.gmra.mrb[0].mxu0 %v85
    %v180 = vpop.f32.mrb[0].mxu0
    %v181 = vadd.f32 0.0, %v180
    %v182 = vpop.f32.mrb[0].mxu0
    %183 = vmatprep.mubr.f32.mxu0 0.0
    %184 = vmatmul.mubr.f32.gmra.mrb[0].mxu0 %v88
    %v185 = vpop.f32.mrb[0].mxu0
    %v186 = vadd.f32 0.0, %v185
    %v187 = vpop.f32.mrb[0].mxu0
    %188 = vmatprep.mubr.f32.mxu0 0.0
    %189 = vmatmul.mubr.f32.gmra.mrb[0].mxu0 %v91
    %v190 = vpop.f32.mrb[0].mxu0
    %v191 = vadd.f32 0.0, %v190
    %v192 = vpop.f32.mrb[0].mxu0
    %193 = vmatprep.mubr.f32.mxu0 0.0
    %194 = vmatmul.mubr.f32.gmra.mrb[0].mxu0 %v94
    %v195 = vpop.f32.mrb[0].mxu0
    %v196 = vadd.f32 0.0, %v195
    %v197 = vpop.f32.mrb[0].mxu0
    %198 = vmatprep.mubr.f32.mxu0 0.0
    %199 = vmatmul.mubr.f32.gmra.mrb[0].mxu0 %v97
    %v200 = vpop.f32.mrb[0].mxu0
    %v201 = vadd.f32 0.0, %v200
    %v202 = vpop.f32.mrb[0].mxu0
    %203 = vdwg.mxu0
    %v204 = vld [vmem:[%s1] sm:$0xff]
    %v205 = vlaneseq
    %v206 = vshrl.u32 %v205, 7
    %v207 = vsub.s32 0, %v206
    %v208 = vrot.slane %v64, %v207
    %v210 = vsel %vm74, %v204, 0
    %212 = vmatprep.subr.mxu0 0.0
    %213 = vmatpush1.msra.mxu0 %v54
    %214 = vmatprep.subr.mxu0 0.0
    %215 = vmatpush1.msra.mxu0 %v55
    %216 = vmatprep.subr.mxu0 0.0
    %217 = vmatpush1.msra.mxu0 %v56
    %218 = vmatprep.subr.mxu0 0.0
    %219 = vmatpush1.msra.mxu0 %v57
    %220 = vmatprep.subr.mxu0 0.0
    %221 = vmatpush1.msra.mxu0 0.0
    %222 = vmatprep.subr.mxu0 0.0
    %223 = vmatpush1.msra.mxu0 0.0
    %224 = vmatprep.subr.mxu0 0.0
    %225 = vmatpush1.msra.mxu0 0.0
    %226 = vmatprep.subr.mxu0 0.0
    %227 = vmatpush1.msra.mxu0 0.0
    %228 = vmatprep.subr.mxu0 0.0
    %229 = vmatpush1.msra.mxu0 0.0
    %230 = vmatprep.subr.mxu0 0.0
    %231 = vmatpush1.msra.mxu0 0.0
    %232 = vmatprep.subr.mxu0 0.0
    %233 = vmatpush1.msra.mxu0 0.0
    %234 = vmatprep.subr.mxu0 0.0
    %235 = vmatpush1.msra.mxu0 0.0
    %236 = vmatprep.subr.mxu0 0.0
    %237 = vmatpush1.msra.mxu0 0.0
    %238 = vmatprep.subr.mxu0 0.0
    %239 = vmatpush1.msra.mxu0 0.0
    %240 = vmatprep.subr.mxu0 0.0
    %241 = vmatpush1.msra.mxu0 0.0
    %242 = vmatprep.subr.mxu0 0.0
    %243 = vmatpush1.msra.mxu0 0.0
    %244 = vmatprep.subr.mxu0 0.0
    %245 = vmatpush1.msra.mxu0 0.0
    %246 = vmatprep.subr.mxu0 0.0
    %247 = vmatpush1.msra.mxu0 0.0
    %248 = vmatprep.subr.mxu0 0.0
    %249 = vmatpush1.msra.mxu0 0.0
    %250 = vmatprep.subr.mxu0 0.0
    %251 = vmatpush1.msra.mxu0 0.0
    %252 = vmatprep.subr.mxu0 0.0
    %253 = vmatpush1.msra.mxu0 0.0
    %254 = vmatprep.subr.mxu0 0.0
    %255 = vmatpush1.msra.mxu0 0.0
    %256 = vmatprep.subr.mxu0 0.0
    %257 = vmatpush1.msra.mxu0 0.0
    %258 = vmatprep.subr.mxu0 0.0
    %259 = vmatpush1.msra.mxu0 0.0
    %260 = vmatprep.subr.mxu0 0.0
    %261 = vmatpush1.msra.mxu0 0.0
    %262 = vmatprep.subr.mxu0 0.0
    %263 = vmatpush1.msra.mxu0 0.0
    %264 = vmatprep.subr.mxu0 0.0
    %265 = vmatpush1.msra.mxu0 0.0
    %266 = vmatprep.subr.mxu0 0.0
    %267 = vmatpush1.msra.mxu0 0.0
    %268 = vmatprep.subr.mxu0 0.0
    %269 = vmatpush1.msra.mxu0 0.0
    %270 = vmatprep.subr.mxu0 0.0
    %271 = vmatpush1.msra.mxu0 0.0
    %272 = vmatprep.subr.mxu0 0.0
    %273 = vmatpush1.msra.mxu0 0.0
    %274 = vmatprep.subr.mxu0 0.0
    %275 = vmatpush1.msra.mxu0 0.0
    %276 = vmatprep.mubr.f32.mxu0 0.0
    %277 = vmatmul.mubr.f32.gmra.mrb[0].mxu0 %v210
    %v278 = vpop.f32.mrb[0].mxu0
    %v279 = vadd.f32 %v208, %v278
    %v280 = vpop.f32.mrb[0].mxu0
    %281 = vdwg.mxu0
    %v283 = vcombine.high %v279, %v279
    %v285 = vunpack.c.l.s4 1966171168
    %v286 = vunpack.c.0.s8 %v285
    %v287 = vlaneseq
    %v288 = vshrl.u32 %v287, 7
    %v289 = vsub.s32 %v286, %v288
    %v290 = vrot.slane %v279, %v289
    %v292 = vunpack.c.l.s4 1966171168
    %v293 = vunpack.c.0.s8 %v292
    %v294 = vlaneseq
    %v295 = vshrl.u32 %v294, 7
    %v296 = vsub.s32 %v293, %v295
    %v297 = vrot.slane %v283, %v296
    %v298 = vcombine.high %v290, %v290
    %v299 = vcombine.high %v297, %v297
    %v301 = vunpack.c.l.s4 1966171168
    %v302 = vunpack.c.0.s8 %v301
    %v303 = vlaneseq
    %v304 = vshrl.u32 %v303, 7
    %v305 = vsub.s32 %v302, %v304
    %v306 = vrot.slane %v290, %v305
    %v308 = vunpack.c.l.s4 1966171168
    %v309 = vunpack.c.0.s8 %v308
    %v310 = vlaneseq
    %v311 = vshrl.u32 %v310, 7
    %v312 = vsub.s32 %v309, %v311
    %v313 = vrot.slane %v297, %v312
    %v315 = vunpack.c.l.s4 1966171168
    %v316 = vunpack.c.0.s8 %v315
    %v317 = vlaneseq
    %v318 = vshrl.u32 %v317, 7
    %v319 = vsub.s32 %v316, %v318
    %v320 = vrot.slane %v298, %v319
    %v322 = vunpack.c.l.s4 1966171168
    %v323 = vunpack.c.0.s8 %v322
    %v324 = vlaneseq
    %v325 = vshrl.u32 %v324, 7
    %v326 = vsub.s32 %v323, %v325
    %v327 = vrot.slane %v299, %v326
    %v328 = vcombine.high %v306, %v306
    %v329 = vcombine.high %v313, %v313
    %v330 = vcombine.high %v320, %v320
    %v331 = vcombine.high %v327, %v327
    %v332 = vlaneseq
    %v333 = vshrl.u32 %v332, 7
    %v334 = vsub.s32 0, %v333
    %v335 = vrot.slane %v306, %v334
    %v336 = vlaneseq
    %v337 = vshrl.u32 %v336, 7
    %v338 = vsub.s32 0, %v337
    %v339 = vrot.slane %v320, %v338
    %v340 = vlaneseq
    %v341 = vshrl.u32 %v340, 7
    %v342 = vsub.s32 0, %v341
    %v343 = vrot.slane %v328, %v342
    %v344 = vlaneseq
    %v345 = vshrl.u32 %v344, 7
    %v346 = vsub.s32 0, %v345
    %v347 = vrot.slane %v330, %v346
    %v348 = vlaneseq
    %v349 = vshrl.u32 %v348, 7
    %v350 = vsub.s32 0, %v349
    %v351 = vrot.slane %v313, %v350
    %v352 = vlaneseq
    %v353 = vshrl.u32 %v352, 7
    %v354 = vsub.s32 0, %v353
    %v355 = vrot.slane %v327, %v354
    %v356 = vlaneseq
    %v357 = vshrl.u32 %v356, 7
    %v358 = vsub.s32 0, %v357
    %v359 = vrot.slane %v329, %v358
    %v360 = vlaneseq
    %v361 = vshrl.u32 %v360, 7
    %v362 = vsub.s32 0, %v361
    %v363 = vrot.slane %v331, %v362
    %v372 = vmul.f32 %v166, %v335
    %v373 = vmul.f32 %v171, %v339
    %v374 = vmul.f32 %v176, %v343
    %v375 = vmul.f32 %v181, %v347
    %v376 = vmul.f32 %v186, %v351
    %v377 = vmul.f32 %v191, %v355
    %v378 = vmul.f32 %v196, %v359
    %v379 = vmul.f32 %v201, %v363
    %v380 = vsel %vm74, %v372, 0.0
    %381 = vadd.xlane.f32.xlu0 %v380
    %v382 = vpop.xlane.xlu0 %381
    %v383 = vsel %vm74, %v373, 0.0
    %384 = vadd.xlane.f32.xlu0 %v383
    %v385 = vpop.xlane.xlu0 %384
    %v386 = vsel %vm74, %v374, 0.0
    %387 = vadd.xlane.f32.xlu0 %v386
    %v388 = vpop.xlane.xlu0 %387
    %v389 = vsel %vm74, %v375, 0.0
    %390 = vadd.xlane.f32.xlu0 %v389
    %v391 = vpop.xlane.xlu0 %390
    %v392 = vsel %vm74, %v376, 0.0
    %393 = vadd.xlane.f32.xlu0 %v392
    %v394 = vpop.xlane.xlu0 %393
    %v395 = vsel %vm74, %v377, 0.0
    %396 = vadd.xlane.f32.xlu0 %v395
    %v397 = vpop.xlane.xlu0 %396
    %v398 = vsel %vm74, %v378, 0.0
    %399 = vadd.xlane.f32.xlu0 %v398
    %v400 = vpop.xlane.xlu0 %399
    %v401 = vsel %vm74, %v379, 0.0
    %402 = vadd.xlane.f32.xlu0 %v401
    %v403 = vpop.xlane.xlu0 %402
    %v404 = vlaneseq
    %v405 = vand.u32 %v404, 127
    %v406 = vld [vmem:[%s2] sm:$0xff]
    %407 = vset.pattern.permute.xlu0 0
    %408 = vperm.xlu0 %407, %v406
    %v409 = vpop.permute.xlu0 %408
    %vm410 = vcmp.lt.s32.totalorder %v405, %v409
    %v419 = vlaneseq
    %v420 = vshrl.u32 %v419, 7
    %v421 = vsub.s32 %v405, %v420
    %v422 = vrot.slane %v382, %v421
    %v423 = vlaneseq
    %v424 = vshrl.u32 %v423, 7
    %v425 = vsub.s32 %v405, %v424
    %v426 = vrot.slane %v385, %v425
    %v427 = vlaneseq
    %v428 = vshrl.u32 %v427, 7
    %v429 = vsub.s32 %v405, %v428
    %v430 = vrot.slane %v388, %v429
    %v431 = vlaneseq
    %v432 = vshrl.u32 %v431, 7
    %v433 = vsub.s32 %v405, %v432
    %v434 = vrot.slane %v391, %v433
    %v435 = vlaneseq
    %v436 = vshrl.u32 %v435, 7
    %v437 = vsub.s32 %v405, %v436
    %v438 = vrot.slane %v394, %v437
    %v439 = vlaneseq
    %v440 = vshrl.u32 %v439, 7
    %v441 = vsub.s32 %v405, %v440
    %v442 = vrot.slane %v397, %v441
    %v443 = vlaneseq
    %v444 = vshrl.u32 %v443, 7
    %v445 = vsub.s32 %v405, %v444
    %v446 = vrot.slane %v400, %v445
    %v447 = vlaneseq
    %v448 = vshrl.u32 %v447, 7
    %v449 = vsub.s32 %v405, %v448
    %v450 = vrot.slane %v403, %v449
    %vm451 = vcmask 1041409
    %v452 = vsel %vm451, %v426, %v422
    %vm453 = vcmask 1042434
    %v454 = vsel %vm453, %v430, %v452
    %vm455 = vcmask 1043459
    %v456 = vsel %vm455, %v434, %v454
    %vm457 = vcmask 1044484
    %v458 = vsel %vm457, %v438, %v456
    %vm459 = vcmask 1045509
    %v460 = vsel %vm459, %v442, %v458
    %vm461 = vcmask 1046534
    %v462 = vsel %vm461, %v446, %v460
    %vm463 = vcmask 1047559
    %v464 = vsel %vm463, %v450, %v462
    %v466 = vsel %vm410, %v464, -1e+30
    %vm467 = vcmask 64512
    %v468 = vsel %vm467, %v466, -inf
    %469 = vmax.xlane.f32.xlu0 %v468
    %v470 = vpop.xlane.xlu0 %469
    %v471 = vsub.f32 %v466, %v470
    %v472 = vmul.f32 %v471, 1.442695
    %v473 = vpow.pop %v472
    %v474 = vsel %vm467, %v473, 0.0
    %475 = vadd.xlane.f32.xlu0 %v474
    %v476 = vpop.xlane.xlu0 %475
    %v477 = vrcp.pop %v476
    %v478 = vmul.f32 %v473, %v477
    %v479 = vlaneseq
    %v480 = vshrl.u32 %v479, 7
    %v481 = vsub.s32 0, %v480
    %v482 = vrot.slane %v478, %v481
    %484 = vbcast.lane.b32.xlu0 %v482, 256
    %v485 = vpop.permute.xlu0 %484
    %v486 = vlaneseq
    %v487 = vshrl.u32 %v486, 7
    %v488 = vsub.s32 1, %v487
    %v489 = vrot.slane %v478, %v488
    %491 = vbcast.lane.b32.xlu0 %v489, 256
    %v492 = vpop.permute.xlu0 %491
    %v493 = vlaneseq
    %v494 = vshrl.u32 %v493, 7
    %v495 = vsub.s32 2, %v494
    %v496 = vrot.slane %v478, %v495
    %498 = vbcast.lane.b32.xlu0 %v496, 256
    %v499 = vpop.permute.xlu0 %498
    %v500 = vlaneseq
    %v501 = vshrl.u32 %v500, 7
    %v502 = vsub.s32 3, %v501
    %v503 = vrot.slane %v478, %v502
    %505 = vbcast.lane.b32.xlu0 %v503, 256
    %v506 = vpop.permute.xlu0 %505
    %v507 = vlaneseq
    %v508 = vshrl.u32 %v507, 7
    %v509 = vsub.s32 4, %v508
    %v510 = vrot.slane %v478, %v509
    %512 = vbcast.lane.b32.xlu0 %v510, 256
    %v513 = vpop.permute.xlu0 %512
    %v514 = vlaneseq
    %v515 = vshrl.u32 %v514, 7
    %v516 = vsub.s32 5, %v515
    %v517 = vrot.slane %v478, %v516
    %519 = vbcast.lane.b32.xlu0 %v517, 256
    %v520 = vpop.permute.xlu0 %519
    %v521 = vlaneseq
    %v522 = vshrl.u32 %v521, 7
    %v523 = vsub.s32 6, %v522
    %v524 = vrot.slane %v478, %v523
    %526 = vbcast.lane.b32.xlu0 %v524, 256
    %v527 = vpop.permute.xlu0 %526
    %v528 = vlaneseq
    %v529 = vshrl.u32 %v528, 7
    %v530 = vsub.s32 7, %v529
    %v531 = vrot.slane %v478, %v530
    %533 = vbcast.lane.b32.xlu0 %v531, 256
    %v534 = vpop.permute.xlu0 %533
    %v535 = vmul.f32 %v166, %v485
    %v536 = vmul.f32 %v171, %v492
    %v537 = vmul.f32 %v176, %v499
    %v538 = vmul.f32 %v181, %v506
    %v539 = vmul.f32 %v186, %v513
    %v540 = vmul.f32 %v191, %v520
    %v541 = vmul.f32 %v196, %v527
    %v542 = vmul.f32 %v201, %v534
    %v543 = vsel %vm74, %v535, 0.0
    %v544 = vrot.slane %v543, 4
    %v545 = vadd.f32 %v543, %v544
    %v546 = vrot.slane %v545, 2
    %v547 = vadd.f32 %v545, %v546
    %v548 = vrot.slane %v547, 1
    %v549 = vadd.f32 %v547, %v548
    %v550 = vsel %vm74, %v536, 0.0
    %v551 = vrot.slane %v550, 4
    %v552 = vadd.f32 %v550, %v551
    %v553 = vrot.slane %v552, 2
    %v554 = vadd.f32 %v552, %v553
    %v555 = vrot.slane %v554, 1
    %v556 = vadd.f32 %v554, %v555
    %v557 = vsel %vm74, %v537, 0.0
    %v558 = vrot.slane %v557, 4
    %v559 = vadd.f32 %v557, %v558
    %v560 = vrot.slane %v559, 2
    %v561 = vadd.f32 %v559, %v560
    %v562 = vrot.slane %v561, 1
    %v563 = vadd.f32 %v561, %v562
    %v564 = vsel %vm74, %v538, 0.0
    %v565 = vrot.slane %v564, 4
    %v566 = vadd.f32 %v564, %v565
    %v567 = vrot.slane %v566, 2
    %v568 = vadd.f32 %v566, %v567
    %v569 = vrot.slane %v568, 1
    %v570 = vadd.f32 %v568, %v569
    %v571 = vsel %vm74, %v539, 0.0
    %v572 = vrot.slane %v571, 4
    %v573 = vadd.f32 %v571, %v572
    %v574 = vrot.slane %v573, 2
    %v575 = vadd.f32 %v573, %v574
    %v576 = vrot.slane %v575, 1
    %v577 = vadd.f32 %v575, %v576
    %v578 = vsel %vm74, %v540, 0.0
    %v579 = vrot.slane %v578, 4
    %v580 = vadd.f32 %v578, %v579
    %v581 = vrot.slane %v580, 2
    %v582 = vadd.f32 %v580, %v581
    %v583 = vrot.slane %v582, 1
    %v584 = vadd.f32 %v582, %v583
    %v585 = vsel %vm74, %v541, 0.0
    %v586 = vrot.slane %v585, 4
    %v587 = vadd.f32 %v585, %v586
    %v588 = vrot.slane %v587, 2
    %v589 = vadd.f32 %v587, %v588
    %v590 = vrot.slane %v589, 1
    %v591 = vadd.f32 %v589, %v590
    %v592 = vsel %vm74, %v542, 0.0
    %v593 = vrot.slane %v592, 4
    %v594 = vadd.f32 %v592, %v593
    %v595 = vrot.slane %v594, 2
    %v596 = vadd.f32 %v594, %v595
    %v597 = vrot.slane %v596, 1
    %v598 = vadd.f32 %v596, %v597
    %v599 = vlaneseq
    %v600 = vshrl.u32 %v599, 7
    %v601 = vsub.s32 0, %v600
    %v602 = vrot.slane %v63, %v601
    %v603 = vadd.f32 %v549, %v602
    %v604 = vadd.f32 %v556, %v602
    %v605 = vadd.f32 %v563, %v602
    %v606 = vadd.f32 %v570, %v602
    %v607 = vadd.f32 %v577, %v602
    %v608 = vadd.f32 %v584, %v602
    %v609 = vadd.f32 %v591, %v602
    %v610 = vadd.f32 %v598, %v602
    %v611 = vlaneseq
    %v612 = vshrl.u32 %v611, 7
    %v613 = vsub.s32 0, %v612
    %v614 = vrot.slane %v65, %v613
    %v623 = vrot.slane %v604, 7
    %v624 = vsel %vm451, %v623, %v603
    %v625 = vrot.slane %v605, 6
    %v626 = vsel %vm453, %v625, %v624
    %v627 = vrot.slane %v606, 5
    %v628 = vsel %vm455, %v627, %v626
    %v629 = vrot.slane %v607, 4
    %v630 = vsel %vm457, %v629, %v628
    %v631 = vrot.slane %v608, 3
    %v632 = vsel %vm459, %v631, %v630
    %v633 = vrot.slane %v609, 2
    %v634 = vsel %vm461, %v633, %v632
    %v635 = vrot.slane %v610, 1
    %v636 = vsel %vm463, %v635, %v634
    %v637 = vsel %vm74, %v636, 0
    %639 = vmatprep.subr.mxu0 0.0
    %640 = vmatpush1.msra.mxu0 %v59
    %641 = vmatprep.subr.mxu0 0.0
    %642 = vmatpush1.msra.mxu0 %v60
    %643 = vmatprep.subr.mxu0 0.0
    %644 = vmatpush1.msra.mxu0 %v61
    %645 = vmatprep.subr.mxu0 0.0
    %646 = vmatpush1.msra.mxu0 %v62
    %647 = vmatprep.subr.mxu0 0.0
    %648 = vmatpush1.msra.mxu0 0.0
    %649 = vmatprep.subr.mxu0 0.0
    %650 = vmatpush1.msra.mxu0 0.0
    %651 = vmatprep.subr.mxu0 0.0
    %652 = vmatpush1.msra.mxu0 0.0
    %653 = vmatprep.subr.mxu0 0.0
    %654 = vmatpush1.msra.mxu0 0.0
    %655 = vmatprep.subr.mxu0 0.0
    %656 = vmatpush1.msra.mxu0 0.0
    %657 = vmatprep.subr.mxu0 0.0
    %658 = vmatpush1.msra.mxu0 0.0
    %659 = vmatprep.subr.mxu0 0.0
    %660 = vmatpush1.msra.mxu0 0.0
    %661 = vmatprep.subr.mxu0 0.0
    %662 = vmatpush1.msra.mxu0 0.0
    %663 = vmatprep.subr.mxu0 0.0
    %664 = vmatpush1.msra.mxu0 0.0
    %665 = vmatprep.subr.mxu0 0.0
    %666 = vmatpush1.msra.mxu0 0.0
    %667 = vmatprep.subr.mxu0 0.0
    %668 = vmatpush1.msra.mxu0 0.0
    %669 = vmatprep.subr.mxu0 0.0
    %670 = vmatpush1.msra.mxu0 0.0
    %671 = vmatprep.subr.mxu0 0.0
    %672 = vmatpush1.msra.mxu0 0.0
    %673 = vmatprep.subr.mxu0 0.0
    %674 = vmatpush1.msra.mxu0 0.0
    %675 = vmatprep.subr.mxu0 0.0
    %676 = vmatpush1.msra.mxu0 0.0
    %677 = vmatprep.subr.mxu0 0.0
    %678 = vmatpush1.msra.mxu0 0.0
    %679 = vmatprep.subr.mxu0 0.0
    %680 = vmatpush1.msra.mxu0 0.0
    %681 = vmatprep.subr.mxu0 0.0
    %682 = vmatpush1.msra.mxu0 0.0
    %683 = vmatprep.subr.mxu0 0.0
    %684 = vmatpush1.msra.mxu0 0.0
    %685 = vmatprep.subr.mxu0 0.0
    %686 = vmatpush1.msra.mxu0 0.0
    %687 = vmatprep.subr.mxu0 0.0
    %688 = vmatpush1.msra.mxu0 0.0
    %689 = vmatprep.subr.mxu0 0.0
    %690 = vmatpush1.msra.mxu0 0.0
    %691 = vmatprep.subr.mxu0 0.0
    %692 = vmatpush1.msra.mxu0 0.0
    %693 = vmatprep.subr.mxu0 0.0
    %694 = vmatpush1.msra.mxu0 0.0
    %695 = vmatprep.subr.mxu0 0.0
    %696 = vmatpush1.msra.mxu0 0.0
    %697 = vmatprep.subr.mxu0 0.0
    %698 = vmatpush1.msra.mxu0 0.0
    %699 = vmatprep.subr.mxu0 0.0
    %700 = vmatpush1.msra.mxu0 0.0
    %701 = vmatprep.subr.mxu0 0.0
    %702 = vmatpush1.msra.mxu0 0.0
    %703 = vmatprep.mubr.f32.mxu0 0.0
    %704 = vmatmul.mubr.f32.gmra.mrb[0].mxu0 %v637
    %v705 = vpop.f32.mrb[0].mxu0
    %v706 = vadd.f32 %v614, %v705
    %v707 = vpop.f32.mrb[0].mxu0
    %708 = vdwg.mxu0
    %709 = vst.msk [vmem:[#allocation7] sm:$0xff] %vm74, %v706
    // Predicated region
    $region30: #{tpu_custom_call.1} parent=1 // pred_check
      _
    $region31: #{tpu_custom_call.1} parent=1 // pred_check_branch
      %711 = sbr.rel (0) target = $region33
    $region32: #{tpu_custom_call.1} parent=1 // pred_region
      %s713 = ssub.s32 128, 128
      %714 = vsyncadd [#allocation4], %s713
      %s716 = sshll.u32 [#allocation7], 4
      %s717 = int_to_ptr.vmem [resolvable:$true] %s716
      %719 = dma.vmem_to_hbm [thread:$0]  %s717, 128, %s5, [#allocation4]
    $region33: #{tpu_custom_call.1} parent=1 // pred_fallthru
      _
    // Predicated region
    $region34: #{tpu_custom_call.1} parent=1 // pred_check
      _
    $region35: #{tpu_custom_call.1} parent=1 // pred_check_branch
      %721 = sbr.rel (0) target = $region37
    $region36: #{tpu_custom_call.1} parent=1 // pred_region
      %722 = dma.done [#allocation4], 128
    $region37: #{tpu_custom_call.1} parent=1 // pred_fallthru
      _
    %723 = vsyncpa [#allocation3], 1
    %724 = vsyncpa [#allocation6], 1
    %725 = vsyncpa [#allocation4], 1

</llo_original>
